<compile_context>
chip_gen: v7x
topology: tpu7x:2x2x1
jax: 0.10.0
libtpu: 0.0.40
codegen_flags: <defaults>
</compile_context>

<pallas_src>
import jax
import jax.numpy as jnp
from jax.experimental import pallas as pl
from jax.experimental.pallas import tpu as pltpu


# ----------------------------------------------------------------------------
# Kernel: both Q-networks in one pass over a batch tile.
# ----------------------------------------------------------------------------
def _double_q_kernel(obs_ref, act_ref,
                     w0o_ref, w0a_ref, b0_ref,
                     w1_ref, b1_ref,
                     w2_ref, b2_ref,
                     q_ref):
    H = w1_ref.shape[-1]

    # ---- Layer 0: fused over both critics (N = 2H), split-K over obs/action.
    h = jnp.dot(obs_ref[...], w0o_ref[...], preferred_element_type=jnp.float32)
    h = h + jnp.dot(act_ref[...], w0a_ref[...],
                    preferred_element_type=jnp.float32)
    # f32 bias + ReLU epilogue (safe on v5e, which has no bf16 VALU).
    h = jnp.maximum(h + b0_ref[...], 0.0)                      # (bb, 2H) f32

    # ---- Per-critic halves (lane-aligned whenever H % 128 == 0).
    h1 = h[:, :H].astype(w1_ref.dtype)
    h2 = h[:, H:].astype(w1_ref.dtype)

    # ---- Layer 1: two dense (H, H) matmuls — no zero block-diagonal work.
    g1 = jnp.dot(h1, w1_ref[0], preferred_element_type=jnp.float32)
    g2 = jnp.dot(h2, w1_ref[1], preferred_element_type=jnp.float32)
    g1 = jnp.maximum(g1 + b1_ref[0], 0.0)                      # (bb, H) f32
    g2 = jnp.maximum(g2 + b1_ref[1], 0.0)

    # ---- Layer 2 (N=1 per critic): VPU broadcast-multiply + lane reduce,
    #      keeping the narrow output off the MXU result path.
    q1 = jnp.sum(g1 * w2_ref[0], axis=-1, keepdims=True)       # (bb, 1) f32
    q2 = jnp.sum(g2 * w2_ref[1], axis=-1, keepdims=True)
    q_ref[...] = jnp.concatenate([q1, q2], axis=-1) + b2_ref[...]


# ----------------------------------------------------------------------------
# Wrapper
# ----------------------------------------------------------------------------
def _round_up(x, m):
    return ((x + m - 1) // m) * m


def _estimate_vmem_bytes(bb, obs_dim, act_dim, H, w_bytes):
    """Rough VMEM footprint: resident weights + streamed tiles + live temps."""
    weights = ((obs_dim + act_dim) * 2 * H + 2 * H * H) * w_bytes   # Buffered(1)
    biases = (2 * H + 2 * H + 2 * H + 2) * 4                        # f32 b0,b1,w2r,b2
    io = 2 * (bb * (obs_dim + act_dim) * w_bytes + bb * 2 * 4)      # double-buffered
    acts = bb * 2 * H * (4 + w_bytes + 4)                           # h, h1/h2, g1/g2
    return weights + biases + io + acts


def double_q_critic_forward(obs, action, fused, *, block_rows=256,
                            vmem_budget_bytes=48 * 1024 * 1024):
    """Twin-Q forward pass. Returns (q1, q2), each (batch, 1) float32."""
    assert obs.shape[0] == action.shape[0]
    batch, obs_dim = obs.shape
    act_dim = action.shape[1]
    H = fused["w1"].shape[-1]
    compute_dtype = fused["w1"].dtype
    w_bytes = jnp.dtype(compute_dtype).itemsize

    # Row tile: multiple of 8 (sublane); default 256 keeps >=2 parallel grid
    # steps for production batches (v7x megacore) while small batches collapse
    # to a single step (no per-step pipeline overhead on single-TC v5e/v6e).
    bb = min(_round_up(block_rows, 8), _round_up(batch, 8))
    while bb > 8 and _estimate_vmem_bytes(bb, obs_dim, act_dim, H,
                                          w_bytes) > vmem_budget_bytes:
        bb = max(_round_up(bb // 2, 8), 8)
    padded = _round_up(batch, bb)
    grid = (padded // bb,)

    obs_c = obs.astype(compute_dtype)
    act_c = action.astype(compute_dtype)
    if padded != batch:
        obs_c = jnp.pad(obs_c, ((0, padded - batch), (0, 0)))
        act_c = jnp.pad(act_c, ((0, padded - batch), (0, 0)))

    def resident(a):
        # Same block every grid step -> fetched once; single-buffered so the
        # never-refetched weights don't pay for double-buffering VMEM.
        return pl.BlockSpec(a.shape, lambda i: (0,) * a.ndim,
                            pipeline_mode=pl.Buffered(1))

    in_specs = [
        pl.BlockSpec((bb, obs_dim), lambda i: (i, 0)),
        pl.BlockSpec((bb, act_dim), lambda i: (i, 0)),
        resident(fused["w0o"]), resident(fused["w0a"]), resident(fused["b0"]),
        resident(fused["w1"]), resident(fused["b1"]),
        resident(fused["w2r"]), resident(fused["b2"]),
    ]
    out_specs = pl.BlockSpec((bb, 2), lambda i: (i, 0))

    est = _estimate_vmem_bytes(bb, obs_dim, act_dim, H, w_bytes)
    vmem_limit = int(min(max(1.25 * est + (2 << 20), 32 << 20), 64 << 20))

    q = pl.pallas_call(
        _double_q_kernel,
        out_shape=jax.ShapeDtypeStruct((padded, 2), jnp.float32),
        grid=grid,
        in_specs=in_specs,
        out_specs=out_specs,
        compiler_params=pltpu.CompilerParams(
            dimension_semantics=("parallel",),
            vmem_limit_bytes=vmem_limit),
    )(obs_c, act_c,
      fused["w0o"], fused["w0a"], fused["b0"],
      fused["w1"], fused["b1"],
      fused["w2r"], fused["b2"])

    q = q[:batch]
    return q[:, 0:1], q[:, 1:2]


# ----------------------------------------------------------------------------
# Parameter construction + one-time Q1/Q2 fusion (done once, not per call).
# ----------------------------------------------------------------------------
def init_params(key, obs_dim, action_dim, hidden_dim):
    """Per-net params, PyTorch-compatible layout: W as (in, out), b as (1, out)."""
    in_dim = obs_dim + action_dim

    def linear(k, fan_in, fan_out):
        w = jax.random.normal(k, (fan_in, fan_out), jnp.float32) / jnp.sqrt(
            jnp.float32(fan_in))
        b = jnp.zeros((1, fan_out), jnp.float32)  # utils.weight_init zeroes biases
        return w, b

    keys = jax.random.split(key, 6)
    q1_w0, q1_b0 = linear(keys[0], in_dim, hidden_dim)
    q1_w1, q1_b1 = linear(keys[1], hidden_dim, hidden_dim)
    q1_w2, q1_b2 = linear(keys[2], hidden_dim, 1)
    q2_w0, q2_b0 = linear(keys[3], in_dim, hidden_dim)
    q2_w1, q2_b1 = linear(keys[4], hidden_dim, hidden_dim)
    q2_w2, q2_b2 = linear(keys[5], hidden_dim, 1)
    return {
        "q1": {"w0": q1_w0, "b0": q1_b0, "w1": q1_w1, "b1": q1_b1,
               "w2": q1_w2, "b2": q1_b2},
        "q2": {"w0": q2_w0, "b0": q2_b0, "w1": q2_w1, "b1": q2_b1,
               "w2": q2_w2, "b2": q2_b2},
    }


def fuse_params(params, obs_dim, compute_dtype=jnp.bfloat16):
    """Fuse/stack Q1 & Q2 weights once at init time.

    Layer 0 fused along the output-feature axis (one matmul feeds both critics),
    layer 1 STACKED as (2, H, H) dense blocks (not zero block-diagonal),
    layer 2 as (2, 1, H) f32 row vectors for the in-kernel VPU reduction.
    """
    p1, p2 = params["q1"], params["q2"]

    w0 = jnp.concatenate([p1["w0"], p2["w0"]], axis=1)          # (in, 2H)
    b0 = jnp.concatenate([p1["b0"], p2["b0"]], axis=1)          # (1, 2H)
    w1 = jnp.stack([p1["w1"], p2["w1"]], axis=0)                # (2, H, H)
    b1 = jnp.stack([p1["b1"], p2["b1"]], axis=0)                # (2, 1, H)
    w2r = jnp.stack([p1["w2"].T, p2["w2"].T], axis=0)           # (2, 1, H)
    b2 = jnp.concatenate([p1["b2"], p2["b2"]], axis=1)          # (1, 2)

    return {
        "w0o": w0[:obs_dim].astype(compute_dtype),              # split-K: obs part
        "w0a": w0[obs_dim:].astype(compute_dtype),              # split-K: action part
        "b0": b0.astype(jnp.float32),
        "w1": w1.astype(compute_dtype),
        "b1": b1.astype(jnp.float32),
        "w2r": w2r.astype(jnp.float32),                         # used on the VPU path
        "b2": b2.astype(jnp.float32),
    }


# ----------------------------------------------------------------------------
# Pure-JAX reference with matching numerics (bf16 MXU layers, f32 final layer).
# ----------------------------------------------------------------------------
def reference_forward(obs, action, params, compute_dtype=jnp.bfloat16):
    x = jnp.concatenate([obs, action], axis=-1).astype(compute_dtype)

    def mlp(p):
        h = jnp.dot(x, p["w0"].astype(compute_dtype),
                    preferred_element_type=jnp.float32) + p["b0"]
        h = jnp.maximum(h, 0.0)
        h = jnp.dot(h.astype(compute_dtype), p["w1"].astype(compute_dtype),
                    preferred_element_type=jnp.float32) + p["b1"]
        h = jnp.maximum(h, 0.0)
        return jnp.dot(h, p["w2"],
                       preferred_element_type=jnp.float32) + p["b2"]

    return mlp(params["q1"]), mlp(params["q2"])


if __name__ == "__main__":
    # Small shapes consistent with the module (hidden_depth = 2).
    batch, obs_dim, action_dim, hidden_dim = 8, 24, 8, 32

    key = jax.random.PRNGKey(0)
    k_obs, k_act, k_params = jax.random.split(key, 3)
    obs = jax.random.normal(k_obs, (batch, obs_dim), jnp.float32)
    action = jax.random.normal(k_act, (batch, action_dim), jnp.float32)

    params = init_params(k_params, obs_dim, action_dim, hidden_dim)
    fused = fuse_params(params, obs_dim, compute_dtype=jnp.bfloat16)

    q1, q2 = double_q_critic_forward(obs, action, fused)
    jax.block_until_ready((q1, q2))

    # Correctness check against the pure-JAX reference (matching numerics).
    r1, r2 = reference_forward(obs, action, params, compute_dtype=jnp.bfloat16)
    assert q1.shape == (batch, 1) and q2.shape == (batch, 1)
    assert jnp.allclose(q1, r1, atol=5e-3, rtol=5e-3)
    assert jnp.allclose(q2, r2, atol=5e-3, rtol=5e-3)

    # TODO(synk): self.outputs caching / log() (TensorBoard histograms) are host-side
    # bookkeeping, not kernel work.
    print("KERNEL_OK")
</pallas_src>

<mosaic_0001>
module attributes {stable_mosaic.version = 11 : i64} {
  func.func @_double_q_kernel(%arg0: i32, %arg1: memref<8x24xbf16, #tpu.memory_space<vmem>>, %arg2: memref<8x8xbf16, #tpu.memory_space<vmem>>, %arg3: memref<24x64xbf16, #tpu.memory_space<vmem>>, %arg4: memref<8x64xbf16, #tpu.memory_space<vmem>>, %arg5: memref<1x64xf32, #tpu.memory_space<vmem>>, %arg6: memref<2x32x32xbf16, #tpu.memory_space<vmem>>, %arg7: memref<2x1x32xf32, #tpu.memory_space<vmem>>, %arg8: memref<2x1x32xf32, #tpu.memory_space<vmem>>, %arg9: memref<1x2xf32, #tpu.memory_space<vmem>>, %arg10: memref<8x2xf32, #tpu.memory_space<vmem>>) attributes {dimension_semantics = [#tpu.dimension_semantics<parallel>], iteration_bounds = array<i64: 1>, scalar_prefetch = 0 : i64, scratch_operands = 0 : i64, tpu.core_type = #tpu.core_type<tc>, window_params = [{transform_indices = @transform_0, window_bounds = array<i64: 8, 24>}, {transform_indices = @transform_1, window_bounds = array<i64: 8, 8>}, {pipeline_mode = #tpu.pipeline_mode<synchronous>, transform_indices = @transform_2, window_bounds = array<i64: 24, 64>}, {pipeline_mode = #tpu.pipeline_mode<synchronous>, transform_indices = @transform_3, window_bounds = array<i64: 8, 64>}, {pipeline_mode = #tpu.pipeline_mode<synchronous>, transform_indices = @transform_4, window_bounds = array<i64: 1, 64>}, {pipeline_mode = #tpu.pipeline_mode<synchronous>, transform_indices = @transform_5, window_bounds = array<i64: 2, 32, 32>}, {pipeline_mode = #tpu.pipeline_mode<synchronous>, transform_indices = @transform_6, window_bounds = array<i64: 2, 1, 32>}, {pipeline_mode = #tpu.pipeline_mode<synchronous>, transform_indices = @transform_7, window_bounds = array<i64: 2, 1, 32>}, {pipeline_mode = #tpu.pipeline_mode<synchronous>, transform_indices = @transform_8, window_bounds = array<i64: 1, 2>}, {transform_indices = @transform_9, window_bounds = array<i64: 8, 2>}]} {
    %c0 = arith.constant 0 : index
    %c0_0 = arith.constant 0 : index
    %0 = vector.load %arg1[%c0, %c0_0] : memref<8x24xbf16, #tpu.memory_space<vmem>>, vector<8x24xbf16>
    %c0_1 = arith.constant 0 : index
    %c0_2 = arith.constant 0 : index
    %1 = vector.load %arg3[%c0_1, %c0_2] : memref<24x64xbf16, #tpu.memory_space<vmem>>, vector<24x64xbf16>
    %cst = arith.constant dense<0.000000e+00> : vector<8x64xf32>
    %2 = tpu.matmul %0, %1, %cst {dimension_numbers = #tpu.dot_dimension_numbers<[1], [0], [0], [1], [0, 0, 1, 1], [], []>} : vector<8x24xbf16>, vector<24x64xbf16>, vector<8x64xf32> -> vector<8x64xf32>
    %c0_3 = arith.constant 0 : index
    %c0_4 = arith.constant 0 : index
    %3 = vector.load %arg2[%c0_3, %c0_4] : memref<8x8xbf16, #tpu.memory_space<vmem>>, vector<8x8xbf16>
    %c0_5 = arith.constant 0 : index
    %c0_6 = arith.constant 0 : index
    %4 = vector.load %arg4[%c0_5, %c0_6] : memref<8x64xbf16, #tpu.memory_space<vmem>>, vector<8x64xbf16>
    %cst_7 = arith.constant dense<0.000000e+00> : vector<8x64xf32>
    %5 = tpu.matmul %3, %4, %cst_7 {dimension_numbers = #tpu.dot_dimension_numbers<[1], [0], [0], [1], [0, 0, 1, 1], [], []>} : vector<8x8xbf16>, vector<8x64xbf16>, vector<8x64xf32> -> vector<8x64xf32>
    %6 = arith.addf %2, %5 : vector<8x64xf32>
    %c0_8 = arith.constant 0 : index
    %c0_9 = arith.constant 0 : index
    %7 = vector.load %arg5[%c0_8, %c0_9] : memref<1x64xf32, #tpu.memory_space<vmem>>, vector<1x64xf32>
    %8 = vector.broadcast %7 : vector<1x64xf32> to vector<8x64xf32>
    %9 = arith.addf %6, %8 : vector<8x64xf32>
    %cst_10 = arith.constant 0.000000e+00 : f32
    %10 = vector.broadcast %cst_10 : f32 to vector<8x64xf32>
    %11 = arith.maximumf %9, %10 : vector<8x64xf32>
    %12 = vector.extract_strided_slice %11 {offsets = [0, 0], sizes = [8, 32], strides = [1, 1]} : vector<8x64xf32> to vector<8x32xf32>
    %13 = arith.truncf %12 : vector<8x32xf32> to vector<8x32xbf16>
    %14 = vector.extract_strided_slice %11 {offsets = [0, 32], sizes = [8, 32], strides = [1, 1]} : vector<8x64xf32> to vector<8x32xf32>
    %15 = arith.truncf %14 : vector<8x32xf32> to vector<8x32xbf16>
    %c0_11 = arith.constant 0 : index
    %c0_12 = arith.constant 0 : index
    %c0_13 = arith.constant 0 : index
    %16 = vector.load %arg6[%c0_11, %c0_12, %c0_13] : memref<2x32x32xbf16, #tpu.memory_space<vmem>>, vector<1x32x32xbf16>
    %17 = vector.shape_cast %16 : vector<1x32x32xbf16> to vector<32x32xbf16>
    %cst_14 = arith.constant dense<0.000000e+00> : vector<8x32xf32>
    %18 = tpu.matmul %13, %17, %cst_14 {dimension_numbers = #tpu.dot_dimension_numbers<[1], [0], [0], [1], [0, 0, 1, 1], [], []>} : vector<8x32xbf16>, vector<32x32xbf16>, vector<8x32xf32> -> vector<8x32xf32>
    %c1 = arith.constant 1 : index
    %c0_15 = arith.constant 0 : index
    %c0_16 = arith.constant 0 : index
    %19 = vector.load %arg6[%c1, %c0_15, %c0_16] : memref<2x32x32xbf16, #tpu.memory_space<vmem>>, vector<1x32x32xbf16>
    %20 = vector.shape_cast %19 : vector<1x32x32xbf16> to vector<32x32xbf16>
    %cst_17 = arith.constant dense<0.000000e+00> : vector<8x32xf32>
    %21 = tpu.matmul %15, %20, %cst_17 {dimension_numbers = #tpu.dot_dimension_numbers<[1], [0], [0], [1], [0, 0, 1, 1], [], []>} : vector<8x32xbf16>, vector<32x32xbf16>, vector<8x32xf32> -> vector<8x32xf32>
    %c0_18 = arith.constant 0 : index
    %c0_19 = arith.constant 0 : index
    %c0_20 = arith.constant 0 : index
    %22 = vector.load %arg7[%c0_18, %c0_19, %c0_20] : memref<2x1x32xf32, #tpu.memory_space<vmem>>, vector<1x1x32xf32>
    %23 = vector.shape_cast %22 : vector<1x1x32xf32> to vector<1x32xf32>
    %24 = vector.broadcast %23 : vector<1x32xf32> to vector<8x32xf32>
    %25 = arith.addf %18, %24 : vector<8x32xf32>
    %cst_21 = arith.constant 0.000000e+00 : f32
    %26 = vector.broadcast %cst_21 : f32 to vector<8x32xf32>
    %27 = arith.maximumf %25, %26 : vector<8x32xf32>
    %c1_22 = arith.constant 1 : index
    %c0_23 = arith.constant 0 : index
    %c0_24 = arith.constant 0 : index
    %28 = vector.load %arg7[%c1_22, %c0_23, %c0_24] : memref<2x1x32xf32, #tpu.memory_space<vmem>>, vector<1x1x32xf32>
    %29 = vector.shape_cast %28 : vector<1x1x32xf32> to vector<1x32xf32>
    %30 = vector.broadcast %29 : vector<1x32xf32> to vector<8x32xf32>
    %31 = arith.addf %21, %30 : vector<8x32xf32>
    %cst_25 = arith.constant 0.000000e+00 : f32
    %32 = vector.broadcast %cst_25 : f32 to vector<8x32xf32>
    %33 = arith.maximumf %31, %32 : vector<8x32xf32>
    %c0_26 = arith.constant 0 : index
    %c0_27 = arith.constant 0 : index
    %c0_28 = arith.constant 0 : index
    %34 = vector.load %arg8[%c0_26, %c0_27, %c0_28] : memref<2x1x32xf32, #tpu.memory_space<vmem>>, vector<1x1x32xf32>
    %35 = vector.shape_cast %34 : vector<1x1x32xf32> to vector<1x32xf32>
    %36 = vector.broadcast %35 : vector<1x32xf32> to vector<8x32xf32>
    %37 = arith.mulf %27, %36 : vector<8x32xf32>
    %cst_29 = arith.constant dense<0.000000e+00> : vector<8xf32>
    %38 = vector.multi_reduction <add>, %37, %cst_29 [1] : vector<8x32xf32> to vector<8xf32>
    %39 = vector.shape_cast %38 : vector<8xf32> to vector<8x1xf32>
    %c1_30 = arith.constant 1 : index
    %c0_31 = arith.constant 0 : index
    %c0_32 = arith.constant 0 : index
    %40 = vector.load %arg8[%c1_30, %c0_31, %c0_32] : memref<2x1x32xf32, #tpu.memory_space<vmem>>, vector<1x1x32xf32>
    %41 = vector.shape_cast %40 : vector<1x1x32xf32> to vector<1x32xf32>
    %42 = vector.broadcast %41 : vector<1x32xf32> to vector<8x32xf32>
    %43 = arith.mulf %33, %42 : vector<8x32xf32>
    %cst_33 = arith.constant dense<0.000000e+00> : vector<8xf32>
    %44 = vector.multi_reduction <add>, %43, %cst_33 [1] : vector<8x32xf32> to vector<8xf32>
    %45 = vector.shape_cast %44 : vector<8xf32> to vector<8x1xf32>
    %46 = tpu.concatenate %39, %45 in 1 : vector<8x1xf32>, vector<8x1xf32> -> vector<8x2xf32>
    %c0_34 = arith.constant 0 : index
    %c0_35 = arith.constant 0 : index
    %47 = vector.load %arg9[%c0_34, %c0_35] : memref<1x2xf32, #tpu.memory_space<vmem>>, vector<1x2xf32>
    %48 = vector.broadcast %47 : vector<1x2xf32> to vector<8x2xf32>
    %49 = arith.addf %46, %48 : vector<8x2xf32>
    %c0_36 = arith.constant 0 : index
    %c0_37 = arith.constant 0 : index
    %50 = vector.load %arg10[%c0_36, %c0_37] : memref<8x2xf32, #tpu.memory_space<vmem>>, vector<8x2xf32>
    tpu.vector_store %arg10[%c0_36, %c0_37], %49 {strides = array<i32>} : memref<8x2xf32, #tpu.memory_space<vmem>>, vector<8x2xf32>,
    return
  }
  func.func @transform_0(%arg0: i32) -> (i32, i32) {
    %c0_i32 = arith.constant 0 : i32
    %c0_i32_0 = arith.constant 0 : i32
    return %arg0, %c0_i32 : i32, i32
  }
  func.func @transform_1(%arg0: i32) -> (i32, i32) {
    %c0_i32 = arith.constant 0 : i32
    %c0_i32_0 = arith.constant 0 : i32
    return %arg0, %c0_i32 : i32, i32
  }
  func.func @transform_2(%arg0: i32) -> (i32, i32) {
    %c0_i32 = arith.constant 0 : i32
    %c0_i32_0 = arith.constant 0 : i32
    %c0_i32_1 = arith.constant 0 : i32
    return %c0_i32, %c0_i32_0 : i32, i32
  }
  func.func @transform_3(%arg0: i32) -> (i32, i32) {
    %c0_i32 = arith.constant 0 : i32
    %c0_i32_0 = arith.constant 0 : i32
    %c0_i32_1 = arith.constant 0 : i32
    return %c0_i32, %c0_i32_0 : i32, i32
  }
  func.func @transform_4(%arg0: i32) -> (i32, i32) {
    %c0_i32 = arith.constant 0 : i32
    %c0_i32_0 = arith.constant 0 : i32
    %c0_i32_1 = arith.constant 0 : i32
    return %c0_i32, %c0_i32_0 : i32, i32
  }
  func.func @transform_5(%arg0: i32) -> (i32, i32, i32) {
    %c0_i32 = arith.constant 0 : i32
    %c0_i32_0 = arith.constant 0 : i32
    %c0_i32_1 = arith.constant 0 : i32
    %c0_i32_2 = arith.constant 0 : i32
    return %c0_i32, %c0_i32_0, %c0_i32_1 : i32, i32, i32
  }
  func.func @transform_6(%arg0: i32) -> (i32, i32, i32) {
    %c0_i32 = arith.constant 0 : i32
    %c0_i32_0 = arith.constant 0 : i32
    %c0_i32_1 = arith.constant 0 : i32
    %c0_i32_2 = arith.constant 0 : i32
    return %c0_i32, %c0_i32_0, %c0_i32_1 : i32, i32, i32
  }
  func.func @transform_7(%arg0: i32) -> (i32, i32, i32) {
    %c0_i32 = arith.constant 0 : i32
    %c0_i32_0 = arith.constant 0 : i32
    %c0_i32_1 = arith.constant 0 : i32
    %c0_i32_2 = arith.constant 0 : i32
    return %c0_i32, %c0_i32_0, %c0_i32_1 : i32, i32, i32
  }
  func.func @transform_8(%arg0: i32) -> (i32, i32) {
    %c0_i32 = arith.constant 0 : i32
    %c0_i32_0 = arith.constant 0 : i32
    %c0_i32_1 = arith.constant 0 : i32
    return %c0_i32, %c0_i32_0 : i32, i32
  }
  func.func @transform_9(%arg0: i32) -> (i32, i32) {
    %c0_i32 = arith.constant 0 : i32
    %c0_i32_0 = arith.constant 0 : i32
    return %arg0, %c0_i32 : i32, i32
  }
}

</mosaic_0001>

<llo_original>
// kernel: tpu_custom_call.1
$region0: #{tpu_custom_call.1}
  #allocation0 [shape = 'u32[]', space=smem, size = 0x4, offset = 0x4, fixed_abs, tag = 'smem constant byte address 0x4 - core index']
  #allocation1 [shape = 'u32[144,128]{1,0:T(1,128)}', space=vmem, size = 0x12000, scoped, tag = 'internal scratch']
  %s0 = inlined_call_operand.hbm [shape: bf16[8,24], index: 0, kind: input, shape index: {}]
  %s1 = inlined_call_operand.hbm [shape: bf16[8,8], index: 1, kind: input, shape index: {}]
  %s2 = inlined_call_operand.hbm [shape: bf16[24,64], index: 2, kind: input, shape index: {}]
  %s3 = inlined_call_operand.vmem [shape: bf16[8,64], index: 3, kind: input, shape index: {}]
  %s4 = inlined_call_operand.vmem [shape: f32[1,64], index: 4, kind: input, shape index: {}]
  %s5 = inlined_call_operand.hbm [shape: bf16[2,32,32], index: 5, kind: input, shape index: {}]
  %s6 = inlined_call_operand.vmem [shape: f32[2,1,32], index: 6, kind: input, shape index: {}]
  %s7 = inlined_call_operand.vmem [shape: f32[2,1,32], index: 7, kind: input, shape index: {}]
  %s8 = inlined_call_operand.vmem [shape: f32[1,2], index: 8, kind: input, shape index: {}]
  %s9 = inlined_call_operand.vmem [shape: f32[8,2], index: 9, kind: output, shape index: {}]
  %s10 = sld [smem:[#allocation0]]
  $region62: #{tpu_custom_call.1} parent=0
    _
  %s12 = ssub.s32 1, %s10
  %s13 = scalar_select 0, %s12, %s10
  $region1: #{tpu_custom_call.1} parent=0
    #allocation2 [shape = 'u8[2048]{0}', space=vmem, size = 0x800, scoped, tag = 'input window, operand 0, single buffered']
    #allocation3 [shape = 's32[1]{0}', space=sflag, size = 0x4, scoped, tag = 'scoped memory for tpu_custom_call.1']
    #allocation4 [shape = 'u8[2048]{0}', space=vmem, size = 0x800, scoped, tag = 'input window, operand 1, single buffered']
    #allocation5 [shape = 's32[1]{0}', space=sflag, size = 0x4, scoped, tag = 'scoped memory for tpu_custom_call.1']
    #allocation6 [shape = 'u8[6144]{0}', space=vmem, size = 0x1800, scoped, tag = 'input window, operand 2, single buffered']
    #allocation7 [shape = 'u8[16384]{0}', space=vmem, size = 0x4000, scoped, tag = 'input window, operand 5, single buffered']
    #allocation8 [shape = 's32[1]{0}', space=sflag, size = 0x4, scoped, tag = 'scoped memory for tpu_custom_call.1']
    %14 = vsyncpa [#allocation3], 0
    %15 = vsyncpa [#allocation5], 0
    %16 = vsyncpa [#allocation8], 0
    // Predicated region
    $region2: #{tpu_custom_call.1} parent=1 // pred_check
      _
    $region3: #{tpu_custom_call.1} parent=1 // pred_check_branch
      %18 = sbr.rel (0) target = $region5
    $region4: #{tpu_custom_call.1} parent=1 // pred_region
      %s20 = ssub.s32 64, 64
      %21 = vsyncadd [#allocation3], %s20
      %s23 = sshll.u32 [#allocation2], 4
      %s24 = int_to_ptr.vmem [resolvable:$true] %s23
      %26 = dma.hbm_to_vmem [thread:$0]  %s0, 64, %s24, [#allocation3]
    $region5: #{tpu_custom_call.1} parent=1 // pred_fallthru
      _
    // Predicated region
    $region6: #{tpu_custom_call.1} parent=1 // pred_check
      _
    $region7: #{tpu_custom_call.1} parent=1 // pred_check_branch
      %28 = sbr.rel (0) target = $region9
    $region8: #{tpu_custom_call.1} parent=1 // pred_region
      %s30 = ssub.s32 64, 64
      %31 = vsyncadd [#allocation5], %s30
      %s33 = sshll.u32 [#allocation4], 4
      %s34 = int_to_ptr.vmem [resolvable:$true] %s33
      %36 = dma.hbm_to_vmem [thread:$0]  %s1, 64, %s34, [#allocation5]
    $region9: #{tpu_custom_call.1} parent=1 // pred_fallthru
      _
    // Predicated region
    $region10: #{tpu_custom_call.1} parent=1 // pred_check
      _
    $region11: #{tpu_custom_call.1} parent=1 // pred_check_branch
      %38 = sbr.rel (0) target = $region13
    $region12: #{tpu_custom_call.1} parent=1 // pred_region
      %s40 = ssub.s32 192, 192
      %41 = vsyncadd [#allocation5], %s40
      %s42 = sshll.u32 [#allocation6], 4
      %s43 = int_to_ptr.vmem [resolvable:$true] %s42
      %48 = dma.hbm_to_vmem [thread:$0]  %s2, 192, %s43, [#allocation5], 64, 64, 4
    $region13: #{tpu_custom_call.1} parent=1 // pred_fallthru
      _
    // Predicated region
    $region14: #{tpu_custom_call.1} parent=1 // pred_check
      _
    $region15: #{tpu_custom_call.1} parent=1 // pred_check_branch
      %50 = sbr.rel (0) target = $region17
    $region16: #{tpu_custom_call.1} parent=1 // pred_region
      _
    $region17: #{tpu_custom_call.1} parent=1 // pred_fallthru
      _
    // Predicated region
    $region18: #{tpu_custom_call.1} parent=1 // pred_check
      _
    $region19: #{tpu_custom_call.1} parent=1 // pred_check_branch
      %52 = sbr.rel (0) target = $region21
    $region20: #{tpu_custom_call.1} parent=1 // pred_region
      _
    $region21: #{tpu_custom_call.1} parent=1 // pred_fallthru
      _
    // Predicated region
    $region22: #{tpu_custom_call.1} parent=1 // pred_check
      _
    $region23: #{tpu_custom_call.1} parent=1 // pred_check_branch
      %54 = sbr.rel (0) target = $region25
    $region24: #{tpu_custom_call.1} parent=1 // pred_region
      %s56 = ssub.s32 512, 512
      %57 = vsyncadd [#allocation8], %s56
      %s58 = sshll.u32 [#allocation7], 4
      %s59 = int_to_ptr.vmem [resolvable:$true] %s58
      %64 = dma.hbm_to_vmem [thread:$0]  %s5, 512, %s59, [#allocation8], 64, 64, 4
    $region25: #{tpu_custom_call.1} parent=1 // pred_fallthru
      _
    // Predicated region
    $region26: #{tpu_custom_call.1} parent=1 // pred_check
      _
    $region27: #{tpu_custom_call.1} parent=1 // pred_check_branch
      %66 = sbr.rel (0) target = $region29
    $region28: #{tpu_custom_call.1} parent=1 // pred_region
      _
    $region29: #{tpu_custom_call.1} parent=1 // pred_fallthru
      _
    // Predicated region
    $region30: #{tpu_custom_call.1} parent=1 // pred_check
      _
    $region31: #{tpu_custom_call.1} parent=1 // pred_check_branch
      %68 = sbr.rel (0) target = $region33
    $region32: #{tpu_custom_call.1} parent=1 // pred_region
      _
    $region33: #{tpu_custom_call.1} parent=1 // pred_fallthru
      _
    // Predicated region
    $region34: #{tpu_custom_call.1} parent=1 // pred_check
      _
    $region35: #{tpu_custom_call.1} parent=1 // pred_check_branch
      %70 = sbr.rel (0) target = $region37
    $region36: #{tpu_custom_call.1} parent=1 // pred_region
      _
    $region37: #{tpu_custom_call.1} parent=1 // pred_fallthru
      _
    // Predicated region
    $region38: #{tpu_custom_call.1} parent=1 // pred_check
      _
    $region39: #{tpu_custom_call.1} parent=1 // pred_check_branch
      %72 = sbr.rel (0) target = $region41
    $region40: #{tpu_custom_call.1} parent=1 // pred_region
      %73 = dma.done [#allocation3], 64
    $region41: #{tpu_custom_call.1} parent=1 // pred_fallthru
      _
    // Predicated region
    $region42: #{tpu_custom_call.1} parent=1 // pred_check
      _
    $region43: #{tpu_custom_call.1} parent=1 // pred_check_branch
      %75 = sbr.rel (0) target = $region45
    $region44: #{tpu_custom_call.1} parent=1 // pred_region
      %76 = dma.done [#allocation5], 64
    $region45: #{tpu_custom_call.1} parent=1 // pred_fallthru
      _
    // Predicated region
    $region46: #{tpu_custom_call.1} parent=1 // pred_check
      _
    $region47: #{tpu_custom_call.1} parent=1 // pred_check_branch
      %78 = sbr.rel (0) target = $region49
    $region48: #{tpu_custom_call.1} parent=1 // pred_region
      %79 = dma.done [#allocation5], 192
    $region49: #{tpu_custom_call.1} parent=1 // pred_fallthru
      _
    // Predicated region
    $region50: #{tpu_custom_call.1} parent=1 // pred_check
      _
    $region51: #{tpu_custom_call.1} parent=1 // pred_check_branch
      %81 = sbr.rel (0) target = $region53
    $region52: #{tpu_custom_call.1} parent=1 // pred_region
      %82 = dma.done [#allocation8], 512
    $region53: #{tpu_custom_call.1} parent=1 // pred_fallthru
      _
    %v84 = vld [vmem:[#allocation2] sm:$0xf]
    %v85 = vld [vmem:[#allocation6] sm:$0xf]
    %v86 = vld [vmem:[#allocation6 + $0x4] sm:$0xf]
    %v87 = vld [vmem:[#allocation6 + $0x8] sm:$0xf]
    %v88 = vld [vmem:[#allocation4] sm:$0xf]
    %v89 = vld [vmem:[%s3] sm:$0xf]
    %vm90 = vcmask 64512
    %v92 = vsel %vm90, %v88, 0
    %vm94 = vcmask 1043456
    %v96 = vsel %vm94, %v89, 0
    %98 = vmatprep.subr.bf16.mxu0 0
    %99 = vmatpush1.bf16.msra.mxu0 %v96
    %100 = vmatprep.subr.bf16.mxu0 0
    %101 = vmatpush1.bf16.msra.mxu0 0
    %102 = vmatprep.subr.bf16.mxu0 0
    %103 = vmatpush1.bf16.msra.mxu0 0
    %104 = vmatprep.subr.bf16.mxu0 0
    %105 = vmatpush1.bf16.msra.mxu0 0
    %106 = vmatprep.subr.bf16.mxu0 0
    %107 = vmatpush1.bf16.msra.mxu0 0
    %108 = vmatprep.subr.bf16.mxu0 0
    %109 = vmatpush1.bf16.msra.mxu0 0
    %110 = vmatprep.subr.bf16.mxu0 0
    %111 = vmatpush1.bf16.msra.mxu0 0
    %112 = vmatprep.subr.bf16.mxu0 0
    %113 = vmatpush1.bf16.msra.mxu0 0
    %114 = vmatprep.subr.bf16.mxu0 0
    %115 = vmatpush1.bf16.msra.mxu0 0
    %116 = vmatprep.subr.bf16.mxu0 0
    %117 = vmatpush1.bf16.msra.mxu0 0
    %118 = vmatprep.subr.bf16.mxu0 0
    %119 = vmatpush1.bf16.msra.mxu0 0
    %120 = vmatprep.subr.bf16.mxu0 0
    %121 = vmatpush1.bf16.msra.mxu0 0
    %122 = vmatprep.subr.bf16.mxu0 0
    %123 = vmatpush1.bf16.msra.mxu0 0
    %124 = vmatprep.subr.bf16.mxu0 0
    %125 = vmatpush1.bf16.msra.mxu0 0
    %126 = vmatprep.subr.bf16.mxu0 0
    %127 = vmatpush1.bf16.msra.mxu0 0
    %128 = vmatprep.subr.bf16.mxu0 0
    %129 = vmatpush1.bf16.msra.mxu0 0
    %130 = vmatprep.mubr.bf16.mxu0 0
    %131 = vmatmul.mubr.bf16.gmra.mrb[0].mxu0 %v92
    %v132 = vpop.f32.mrb[0].mxu0
    %v133 = vadd.f32 0.0, %v132
    %v134 = vpop.f32.mrb[0].mxu0
    %v135 = vpop.f32.mrb[0].mxu0
    %v136 = vpop.f32.mrb[0].mxu0
    %137 = vdwg.mxu0
    %v141 = vunpack.c.l.b16 %v85
    %v142 = vunpack.c.l.b16 %v86
    %v143 = vunpack.c.l.b16 %v87
    %v144 = vpack.c.b16 %v142, %v141
    %v145 = vpack.c.b16 %v143, %v143
    %vm147 = vcmask 195584
    %v149 = vsel %vm147, %v84, 0
    %v152 = vsel %vm94, %v145, 0
    %154 = vmatprep.subr.bf16.mxu0 0
    %155 = vmatpush1.bf16.msra.mxu0 %v144
    %156 = vmatprep.subr.bf16.mxu0 0
    %157 = vmatpush1.bf16.msra.mxu0 %v152
    %158 = vmatprep.subr.bf16.mxu0 0
    %159 = vmatpush1.bf16.msra.mxu0 0
    %160 = vmatprep.subr.bf16.mxu0 0
    %161 = vmatpush1.bf16.msra.mxu0 0
    %162 = vmatprep.subr.bf16.mxu0 0
    %163 = vmatpush1.bf16.msra.mxu0 0
    %164 = vmatprep.subr.bf16.mxu0 0
    %165 = vmatpush1.bf16.msra.mxu0 0
    %166 = vmatprep.subr.bf16.mxu0 0
    %167 = vmatpush1.bf16.msra.mxu0 0
    %168 = vmatprep.subr.bf16.mxu0 0
    %169 = vmatpush1.bf16.msra.mxu0 0
    %170 = vmatprep.subr.bf16.mxu0 0
    %171 = vmatpush1.bf16.msra.mxu0 0
    %172 = vmatprep.subr.bf16.mxu0 0
    %173 = vmatpush1.bf16.msra.mxu0 0
    %174 = vmatprep.subr.bf16.mxu0 0
    %175 = vmatpush1.bf16.msra.mxu0 0
    %176 = vmatprep.subr.bf16.mxu0 0
    %177 = vmatpush1.bf16.msra.mxu0 0
    %178 = vmatprep.subr.bf16.mxu0 0
    %179 = vmatpush1.bf16.msra.mxu0 0
    %180 = vmatprep.subr.bf16.mxu0 0
    %181 = vmatpush1.bf16.msra.mxu0 0
    %182 = vmatprep.subr.bf16.mxu0 0
    %183 = vmatpush1.bf16.msra.mxu0 0
    %184 = vmatprep.subr.bf16.mxu0 0
    %185 = vmatpush1.bf16.msra.mxu0 0
    %186 = vmatprep.mubr.bf16.mxu0 0
    %187 = vmatmul.mubr.bf16.gmra.mrb[0].mxu0 %v149
    %v188 = vpop.f32.mrb[0].mxu0
    %v189 = vadd.f32 %v133, %v188
    %v190 = vpop.f32.mrb[0].mxu0
    %v191 = vpop.f32.mrb[0].mxu0
    %v192 = vpop.f32.mrb[0].mxu0
    %193 = vdwg.mxu0
    %v194 = vld [vmem:[%s4] sm:$0x1]
    %v196 = vlaneseq
    %v197 = vshrl.u32 %v196, 7
    %v198 = vsub.s32 0, %v197
    %v199 = vrot.slane %v194, %v198
    %v201 = vadd.f32 %v189, %v199
    %v202 = vmax.f32 %v201, 0.0
    %v203 = vpack.c.bf16 %v202, %v202
    %v204 = vld [vmem:[#allocation7] sm:$0xf]
    %v205 = vld [vmem:[#allocation7 + $0x4] sm:$0xf]
    %v206 = vld [vmem:[#allocation7 + $0x8] sm:$0xf]
    %v207 = vld [vmem:[#allocation7 + $0xc] sm:$0xf]
    %s208 = scalar_lea.vmem [#allocation7], 16
    %v209 = vld [vmem:[%s208] sm:$0xf]
    %v210 = vld [vmem:[%s208 + $0x4] sm:$0xf]
    %v211 = vld [vmem:[%s208 + $0x8] sm:$0xf]
    %v212 = vld [vmem:[%s208 + $0xc] sm:$0xf]
    %v213 = vld [vmem:[%s6] sm:$0x1]
    %v215 = vlaneseq
    %v216 = vshrl.u32 %v215, 7
    %v217 = vsub.s32 0, %v216
    %v218 = vrot.slane %v213, %v217
    %v224 = vunpack.c.l.b16 %v204
    %v225 = vunpack.c.l.b16 %v205
    %v226 = vunpack.c.l.b16 %v206
    %v227 = vunpack.c.l.b16 %v207
    %v228 = vpack.c.b16 %v225, %v224
    %v229 = vpack.c.b16 %v227, %v226
    %vm232 = vcmask 261120
    %v234 = vsel %vm232, %v203, 0
    %236 = vmatprep.subr.bf16.mxu0 0
    %237 = vmatpush1.bf16.msra.mxu0 %v228
    %238 = vmatprep.subr.bf16.mxu0 0
    %239 = vmatpush1.bf16.msra.mxu0 %v229
    %240 = vmatprep.subr.bf16.mxu0 0
    %241 = vmatpush1.bf16.msra.mxu0 0
    %242 = vmatprep.subr.bf16.mxu0 0
    %243 = vmatpush1.bf16.msra.mxu0 0
    %244 = vmatprep.subr.bf16.mxu0 0
    %245 = vmatpush1.bf16.msra.mxu0 0
    %246 = vmatprep.subr.bf16.mxu0 0
    %247 = vmatpush1.bf16.msra.mxu0 0
    %248 = vmatprep.subr.bf16.mxu0 0
    %249 = vmatpush1.bf16.msra.mxu0 0
    %250 = vmatprep.subr.bf16.mxu0 0
    %251 = vmatpush1.bf16.msra.mxu0 0
    %252 = vmatprep.subr.bf16.mxu0 0
    %253 = vmatpush1.bf16.msra.mxu0 0
    %254 = vmatprep.subr.bf16.mxu0 0
    %255 = vmatpush1.bf16.msra.mxu0 0
    %256 = vmatprep.subr.bf16.mxu0 0
    %257 = vmatpush1.bf16.msra.mxu0 0
    %258 = vmatprep.subr.bf16.mxu0 0
    %259 = vmatpush1.bf16.msra.mxu0 0
    %260 = vmatprep.subr.bf16.mxu0 0
    %261 = vmatpush1.bf16.msra.mxu0 0
    %262 = vmatprep.subr.bf16.mxu0 0
    %263 = vmatpush1.bf16.msra.mxu0 0
    %264 = vmatprep.subr.bf16.mxu0 0
    %265 = vmatpush1.bf16.msra.mxu0 0
    %266 = vmatprep.subr.bf16.mxu0 0
    %267 = vmatpush1.bf16.msra.mxu0 0
    %268 = vmatprep.mubr.bf16.mxu0 0
    %269 = vmatmul.mubr.bf16.gmra.mrb[0].mxu0 %v234
    %v270 = vpop.f32.mrb[0].mxu0
    %v271 = vadd.f32 %v218, %v270
    %v272 = vpop.f32.mrb[0].mxu0
    %v273 = vpop.f32.mrb[0].mxu0
    %v274 = vpop.f32.mrb[0].mxu0
    %275 = vdwg.mxu0
    %v276 = vmax.f32 %v271, 0.0
    %s277 = scalar_lea.vmem %s6, 1
    %v278 = vld [vmem:[%s277] sm:$0x1]
    %v280 = vlaneseq
    %v281 = vshrl.u32 %v280, 7
    %v282 = vsub.s32 0, %v281
    %v283 = vrot.slane %v278, %v282
    %286 = vrot.lane.b32.xlu0 %v203, 96
    %v287 = vpop.permute.xlu0 %286
    %v292 = vunpack.c.l.b16 %v209
    %v293 = vunpack.c.l.b16 %v210
    %v294 = vunpack.c.l.b16 %v211
    %v295 = vunpack.c.l.b16 %v212
    %v296 = vpack.c.b16 %v293, %v292
    %v297 = vpack.c.b16 %v295, %v294
    %v301 = vsel %vm232, %v287, 0
    %303 = vmatprep.subr.bf16.mxu0 0
    %304 = vmatpush1.bf16.msra.mxu0 %v296
    %305 = vmatprep.subr.bf16.mxu0 0
    %306 = vmatpush1.bf16.msra.mxu0 %v297
    %307 = vmatprep.subr.bf16.mxu0 0
    %308 = vmatpush1.bf16.msra.mxu0 0
    %309 = vmatprep.subr.bf16.mxu0 0
    %310 = vmatpush1.bf16.msra.mxu0 0
    %311 = vmatprep.subr.bf16.mxu0 0
    %312 = vmatpush1.bf16.msra.mxu0 0
    %313 = vmatprep.subr.bf16.mxu0 0
    %314 = vmatpush1.bf16.msra.mxu0 0
    %315 = vmatprep.subr.bf16.mxu0 0
    %316 = vmatpush1.bf16.msra.mxu0 0
    %317 = vmatprep.subr.bf16.mxu0 0
    %318 = vmatpush1.bf16.msra.mxu0 0
    %319 = vmatprep.subr.bf16.mxu0 0
    %320 = vmatpush1.bf16.msra.mxu0 0
    %321 = vmatprep.subr.bf16.mxu0 0
    %322 = vmatpush1.bf16.msra.mxu0 0
    %323 = vmatprep.subr.bf16.mxu0 0
    %324 = vmatpush1.bf16.msra.mxu0 0
    %325 = vmatprep.subr.bf16.mxu0 0
    %326 = vmatpush1.bf16.msra.mxu0 0
    %327 = vmatprep.subr.bf16.mxu0 0
    %328 = vmatpush1.bf16.msra.mxu0 0
    %329 = vmatprep.subr.bf16.mxu0 0
    %330 = vmatpush1.bf16.msra.mxu0 0
    %331 = vmatprep.subr.bf16.mxu0 0
    %332 = vmatpush1.bf16.msra.mxu0 0
    %333 = vmatprep.subr.bf16.mxu0 0
    %334 = vmatpush1.bf16.msra.mxu0 0
    %335 = vmatprep.mubr.bf16.mxu0 0
    %336 = vmatmul.mubr.bf16.gmra.mrb[0].mxu0 %v301
    %v337 = vpop.f32.mrb[0].mxu0
    %v338 = vadd.f32 %v283, %v337
    %v339 = vpop.f32.mrb[0].mxu0
    %v340 = vpop.f32.mrb[0].mxu0
    %v341 = vpop.f32.mrb[0].mxu0
    %342 = vdwg.mxu0
    %v343 = vmax.f32 %v338, 0.0
    %v344 = vld [vmem:[%s7] sm:$0x1]
    %v346 = vlaneseq
    %v347 = vshrl.u32 %v346, 7
    %v348 = vsub.s32 0, %v347
    %v349 = vrot.slane %v344, %v348
    %v351 = vmul.f32 %v276, %v349
    %v352 = vsel %vm232, %v351, 0.0
    %353 = vadd.xlane.f32.xlu0 %v352
    %v354 = vpop.xlane.xlu0 %353
    %s355 = scalar_lea.vmem %s7, 1
    %v356 = vld [vmem:[%s355] sm:$0x1]
    %v358 = vlaneseq
    %v359 = vshrl.u32 %v358, 7
    %v360 = vsub.s32 0, %v359
    %v361 = vrot.slane %v356, %v360
    %v363 = vmul.f32 %v343, %v361
    %v364 = vsel %vm232, %v363, 0.0
    %365 = vadd.xlane.f32.xlu0 %v364
    %v366 = vpop.xlane.xlu0 %365
    %vm367 = vcmask 7168
    %v368 = vsel %vm367, %v354, %v366
    %v369 = vld [vmem:[%s8] sm:$0x1]
    %v371 = vlaneseq
    %v372 = vshrl.u32 %v371, 7
    %v373 = vsub.s32 0, %v372
    %v374 = vrot.slane %v369, %v373
    %v376 = vadd.f32 %v368, %v374
    %vm377 = vcmask 15360
    %378 = vst.msk [vmem:[%s9] sm:$0xff] %vm377, %v376
    // Predicated region
    $region54: #{tpu_custom_call.1} parent=1 // pred_check
      _
    $region55: #{tpu_custom_call.1} parent=1 // pred_check_branch
      %380 = sbr.rel (0) target = $region57
    $region56: #{tpu_custom_call.1} parent=1 // pred_region
      _
    $region57: #{tpu_custom_call.1} parent=1 // pred_fallthru
      _
    // Predicated region
    $region58: #{tpu_custom_call.1} parent=1 // pred_check
      _
    $region59: #{tpu_custom_call.1} parent=1 // pred_check_branch
      %382 = sbr.rel (0) target = $region61
    $region60: #{tpu_custom_call.1} parent=1 // pred_region
      _
    $region61: #{tpu_custom_call.1} parent=1 // pred_fallthru
      _
    %383 = vsyncpa [#allocation3], 1
    %384 = vsyncpa [#allocation5], 1
    %385 = vsyncpa [#allocation8], 1

</llo_original>
